<compile_context>
chip_gen: v7x
topology: tpu7x:2x2x1
jax: 0.10.0
libtpu: 0.0.40
codegen_flags: <defaults>
</compile_context>

<pallas_src>
from functools import partial

import numpy as np
import jax
import jax.numpy as jnp
from jax.experimental import pallas as pl
from jax.experimental.pallas import tpu as pltpu

NUM_OF_COORD = 16                       # config.NUM_OF_COORD
N_POINTS = NUM_OF_COORD * NUM_OF_COORD  # 256 grid points
IMAGE_SIZE = 240.0                      # module constructor default
IMG_W = 240.0                           # img_size = [[240, 240, 1]] inside forward()
IMG_H = 240.0
CENTER = 1.0 + (IMG_W - 1.0) * 0.5      # 120.5  (norm offset; same for x/y, square img)
INV_SCALE = (IMG_W - 1.0) * 0.5         # 119.5  (1 / norm scale)


# ---------------------------------------------------------------------------------
# Coordinate normalization helpers (PointsToUnitCoords / PointsToPixelCoords)
#   norm(x, L)   = (x - 1 - (L-1)/2) * 2 / (L-1)
#   unnorm(x, L) = x * (L-1)/2 + 1 + (L-1)/2
# ---------------------------------------------------------------------------------
def _norm(x, L):
    return (x - (1.0 + (L - 1.0) * 0.5)) * (2.0 / (L - 1.0))


def _unnorm(x, L):
    return x * ((L - 1.0) * 0.5) + (1.0 + (L - 1.0) * 0.5)


def build_coord(num=NUM_OF_COORD, image_size=IMAGE_SIZE):
    # Exactly the module constructor: [[i*S/N, j*S/N] ...], transposed to (2, N*N).
    c = []
    for i in range(num):
        for j in range(num):
            c.append([float(i) * image_size / num, float(j) * image_size / num])
    return np.array(c, dtype=np.float32).T  # (2, N*N)


def _grid_moments():
    # Moments of the centered grid q = coord - (1 + (L-1)/2), computed once on host in
    # float64 and baked into the kernel as compile-time constants.
    q = build_coord().astype(np.float64) - CENTER      # (2, P)
    P = float(q.shape[1])
    Sx = float(q[0].sum())
    Sy = float(q[1].sum())
    Sxx = float((q[0] * q[0]).sum())
    Sxy = float((q[0] * q[1]).sum())
    Syy = float((q[1] * q[1]).sum())
    return (P, Sx, Sy, Sxx, Sxy, Syy)


GRID_MOMENTS = _grid_moments()


# ---------------------------------------------------------------------------------
# Pallas kernel: closed-form quadratic loss, O(B) lane-dense work, scalar SMEM output.
# ---------------------------------------------------------------------------------
def _cycle_loss_kernel(tf_ref, tb_ref, out_ref, *, moments, inv_count):
    # tf_ref / tb_ref : (6, B) f32 in VMEM, rows = [a11, a12, tx, a21, a22, ty]
    # out_ref         : (1, 1) f32 in SMEM
    P, Sx, Sy, Sxx, Sxy, Syy = moments

    f11 = tf_ref[0:1, :]; f12 = tf_ref[1:2, :]; f13 = tf_ref[2:3, :]
    f21 = tf_ref[3:4, :]; f22 = tf_ref[4:5, :]; f23 = tf_ref[5:6, :]
    b11 = tb_ref[0:1, :]; b12 = tb_ref[1:2, :]; b13 = tb_ref[2:3, :]
    b21 = tb_ref[3:4, :]; b22 = tb_ref[4:5, :]; b23 = tb_ref[5:6, :]

    # Composed linear part M = A_b @ A_f (per sample, elementwise over lanes).
    m11 = b11 * f11 + b12 * f21
    m12 = b11 * f12 + b12 * f22
    m21 = b21 * f11 + b22 * f21
    m22 = b21 * f12 + b22 * f22
    # Composed translation in pixel units: u = (A_b t_f + t_b) * (L-1)/2.
    ux = (b11 * f13 + b12 * f23 + b13) * INV_SCALE
    uy = (b21 * f13 + b22 * f23 + b23) * INV_SCALE

    # Residual per point: r(q) = (I - M) q - u, with q = coord - center.
    a11 = 1.0 - m11; a12 = -m12
    a21 = -m21;      a22 = 1.0 - m22

    def row_sq_sum(r1, r2, v):
        # sum_q (r1*qx + r2*qy - v)^2 expanded over precomputed grid moments.
        return (r1 * r1 * Sxx + 2.0 * (r1 * r2) * Sxy + r2 * r2 * Syy
                - 2.0 * v * (r1 * Sx + r2 * Sy) + P * (v * v))

    per_sample = row_sq_sum(a11, a12, ux) + row_sq_sum(a21, a22, uy)   # (1, B)
    out_ref[0, 0] = jnp.sum(per_sample) * inv_count


def cycle_loss_pallas(theta_forward, theta_backward):
    b = theta_forward.shape[0]
    # Lane-dense layout: (6, B).  Wrapper transpose is layout plumbing only.
    tf_t = jnp.asarray(theta_forward, jnp.float32).T
    tb_t = jnp.asarray(theta_backward, jnp.float32).T
    kernel = partial(
        _cycle_loss_kernel,
        moments=GRID_MOMENTS,
        inv_count=1.0 / (float(N_POINTS) * float(b)),
    )
    out = pl.pallas_call(
        kernel,
        out_shape=jax.ShapeDtypeStruct((1, 1), jnp.float32),
        in_specs=[
            pl.BlockSpec(memory_space=pltpu.MemorySpace.VMEM),   # theta_forward (6, B)
            pl.BlockSpec(memory_space=pltpu.MemorySpace.VMEM),   # theta_backward (6, B)
        ],
        out_specs=pl.BlockSpec(memory_space=pltpu.MemorySpace.SMEM),
        cost_estimate=pl.CostEstimate(
            flops=40 * b,
            transcendentals=0,
            bytes_accessed=2 * 6 * b * 4 + 4,
        ),
    )(tf_t, tb_t)
    return out[0, 0]


# ---------------------------------------------------------------------------------
# Pure-JAX reference with the module's EXACT op sequence (including the norm/unnorm
# round trip) -- used only to validate the closed-form kernel.
# ---------------------------------------------------------------------------------
def cycle_loss_reference(theta_forward, theta_backward, coord):
    b = theta_forward.shape[0]
    pts = jnp.broadcast_to(coord[None], (b, 2, N_POINTS))  # (B, 2, P)

    def norm(p):
        return jnp.stack([_norm(p[:, 0], IMG_W), _norm(p[:, 1], IMG_H)], axis=1)

    def unnorm(p):
        return jnp.stack([_unnorm(p[:, 0], IMG_W), _unnorm(p[:, 1], IMG_H)], axis=1)

    def aff(theta, p):
        t = theta.reshape(-1, 2, 3)
        return jnp.einsum('bij,bjp->bip', t[:, :, :2], p,
                          precision='highest') + t[:, :, 2][..., None]

    fwd_norm = aff(theta_forward, norm(pts))
    fwd_coord = unnorm(fwd_norm)
    bwd_norm = aff(theta_backward, norm(fwd_coord))
    bwd_coord = unnorm(bwd_norm)
    return jnp.sum((pts - bwd_coord) ** 2) / N_POINTS / b


if __name__ == "__main__":
    B = 2
    key = jax.random.PRNGKey(0)
    k1, k2 = jax.random.split(key)

    # Near-identity affine transforms (row-major 2x3) for forward and backward warps.
    ident = jnp.array([1.0, 0.0, 0.0, 0.0, 1.0, 0.0], jnp.float32)
    theta_forward = ident[None, :] + 0.1 * jax.random.normal(k1, (B, 6), jnp.float32)
    theta_backward = ident[None, :] + 0.1 * jax.random.normal(k2, (B, 6), jnp.float32)

    loss = cycle_loss_pallas(theta_forward, theta_backward)
    loss = jax.block_until_ready(loss)

    coord = jnp.asarray(build_coord())  # (2, 256)
    ref = cycle_loss_reference(theta_forward, theta_backward, coord)
    np.testing.assert_allclose(np.asarray(loss), np.asarray(ref), rtol=1e-3, atol=1e-2)

    print("KERNEL_OK")
</pallas_src>

<mosaic_0001>
module attributes {stable_mosaic.version = 11 : i64} {
  func.func @_cycle_loss_kernel(%arg0: memref<6x2xf32, #tpu.memory_space<vmem>>, %arg1: memref<6x2xf32, #tpu.memory_space<vmem>>, %arg2: memref<1x1xf32, #tpu.memory_space<smem>>) attributes {dimension_semantics = [], scalar_prefetch = 0 : i64, scratch_operands = 0 : i64, tpu.core_type = #tpu.core_type<tc>} {
    %c0 = arith.constant 0 : index
    %c0_0 = arith.constant 0 : index
    %0 = vector.load %arg0[%c0, %c0_0] : memref<6x2xf32, #tpu.memory_space<vmem>>, vector<1x2xf32>
    %c1 = arith.constant 1 : index
    %c0_1 = arith.constant 0 : index
    %1 = vector.load %arg0[%c1, %c0_1] : memref<6x2xf32, #tpu.memory_space<vmem>>, vector<1x2xf32>
    %c2 = arith.constant 2 : index
    %c0_2 = arith.constant 0 : index
    %2 = vector.load %arg0[%c2, %c0_2] : memref<6x2xf32, #tpu.memory_space<vmem>>, vector<1x2xf32>
    %c3 = arith.constant 3 : index
    %c0_3 = arith.constant 0 : index
    %3 = vector.load %arg0[%c3, %c0_3] : memref<6x2xf32, #tpu.memory_space<vmem>>, vector<1x2xf32>
    %c4 = arith.constant 4 : index
    %c0_4 = arith.constant 0 : index
    %4 = vector.load %arg0[%c4, %c0_4] : memref<6x2xf32, #tpu.memory_space<vmem>>, vector<1x2xf32>
    %c5 = arith.constant 5 : index
    %c0_5 = arith.constant 0 : index
    %5 = vector.load %arg0[%c5, %c0_5] : memref<6x2xf32, #tpu.memory_space<vmem>>, vector<1x2xf32>
    %c0_6 = arith.constant 0 : index
    %c0_7 = arith.constant 0 : index
    %6 = vector.load %arg1[%c0_6, %c0_7] : memref<6x2xf32, #tpu.memory_space<vmem>>, vector<1x2xf32>
    %c1_8 = arith.constant 1 : index
    %c0_9 = arith.constant 0 : index
    %7 = vector.load %arg1[%c1_8, %c0_9] : memref<6x2xf32, #tpu.memory_space<vmem>>, vector<1x2xf32>
    %c2_10 = arith.constant 2 : index
    %c0_11 = arith.constant 0 : index
    %8 = vector.load %arg1[%c2_10, %c0_11] : memref<6x2xf32, #tpu.memory_space<vmem>>, vector<1x2xf32>
    %c3_12 = arith.constant 3 : index
    %c0_13 = arith.constant 0 : index
    %9 = vector.load %arg1[%c3_12, %c0_13] : memref<6x2xf32, #tpu.memory_space<vmem>>, vector<1x2xf32>
    %c4_14 = arith.constant 4 : index
    %c0_15 = arith.constant 0 : index
    %10 = vector.load %arg1[%c4_14, %c0_15] : memref<6x2xf32, #tpu.memory_space<vmem>>, vector<1x2xf32>
    %c5_16 = arith.constant 5 : index
    %c0_17 = arith.constant 0 : index
    %11 = vector.load %arg1[%c5_16, %c0_17] : memref<6x2xf32, #tpu.memory_space<vmem>>, vector<1x2xf32>
    %12 = arith.mulf %6, %0 : vector<1x2xf32>
    %13 = arith.mulf %7, %3 : vector<1x2xf32>
    %14 = arith.addf %12, %13 : vector<1x2xf32>
    %15 = arith.mulf %6, %1 : vector<1x2xf32>
    %16 = arith.mulf %7, %4 : vector<1x2xf32>
    %17 = arith.addf %15, %16 : vector<1x2xf32>
    %18 = arith.mulf %9, %0 : vector<1x2xf32>
    %19 = arith.mulf %10, %3 : vector<1x2xf32>
    %20 = arith.addf %18, %19 : vector<1x2xf32>
    %21 = arith.mulf %9, %1 : vector<1x2xf32>
    %22 = arith.mulf %10, %4 : vector<1x2xf32>
    %23 = arith.addf %21, %22 : vector<1x2xf32>
    %24 = arith.mulf %6, %2 : vector<1x2xf32>
    %25 = arith.mulf %7, %5 : vector<1x2xf32>
    %26 = arith.addf %24, %25 : vector<1x2xf32>
    %27 = arith.addf %26, %8 : vector<1x2xf32>
    %cst = arith.constant 1.195000e+02 : f32
    %28 = vector.broadcast %cst : f32 to vector<1x2xf32>
    %29 = arith.mulf %27, %28 : vector<1x2xf32>
    %30 = arith.mulf %9, %2 : vector<1x2xf32>
    %31 = arith.mulf %10, %5 : vector<1x2xf32>
    %32 = arith.addf %30, %31 : vector<1x2xf32>
    %33 = arith.addf %32, %11 : vector<1x2xf32>
    %cst_18 = arith.constant 1.195000e+02 : f32
    %34 = vector.broadcast %cst_18 : f32 to vector<1x2xf32>
    %35 = arith.mulf %33, %34 : vector<1x2xf32>
    %cst_19 = arith.constant 1.000000e+00 : f32
    %36 = vector.broadcast %cst_19 : f32 to vector<1x2xf32>
    %37 = arith.subf %36, %14 : vector<1x2xf32>
    %cst_20 = arith.constant 0.000000e+00 : f32
    %38 = vector.broadcast %cst_20 : f32 to vector<1x2xf32>
    %39 = arith.subf %38, %17 : vector<1x2xf32>
    %cst_21 = arith.constant 0.000000e+00 : f32
    %40 = vector.broadcast %cst_21 : f32 to vector<1x2xf32>
    %41 = arith.subf %40, %20 : vector<1x2xf32>
    %cst_22 = arith.constant 1.000000e+00 : f32
    %42 = vector.broadcast %cst_22 : f32 to vector<1x2xf32>
    %43 = arith.subf %42, %23 : vector<1x2xf32>
    %44 = arith.mulf %37, %37 : vector<1x2xf32>
    %cst_23 = arith.constant 0x49976A00 : f32
    %45 = vector.broadcast %cst_23 : f32 to vector<1x2xf32>
    %46 = arith.mulf %44, %45 : vector<1x2xf32>
    %47 = arith.mulf %37, %39 : vector<1x2xf32>
    %cst_24 = arith.constant 2.000000e+00 : f32
    %48 = vector.broadcast %cst_24 : f32 to vector<1x2xf32>
    %49 = arith.mulf %48, %47 : vector<1x2xf32>
    %cst_25 = arith.constant 1.638400e+04 : f32
    %50 = vector.broadcast %cst_25 : f32 to vector<1x2xf32>
    %51 = arith.mulf %49, %50 : vector<1x2xf32>
    %52 = arith.addf %46, %51 : vector<1x2xf32>
    %53 = arith.mulf %39, %39 : vector<1x2xf32>
    %cst_26 = arith.constant 0x49976A00 : f32
    %54 = vector.broadcast %cst_26 : f32 to vector<1x2xf32>
    %55 = arith.mulf %53, %54 : vector<1x2xf32>
    %56 = arith.addf %52, %55 : vector<1x2xf32>
    %cst_27 = arith.constant 2.000000e+00 : f32
    %57 = vector.broadcast %cst_27 : f32 to vector<1x2xf32>
    %58 = arith.mulf %57, %29 : vector<1x2xf32>
    %cst_28 = arith.constant -2.048000e+03 : f32
    %59 = vector.broadcast %cst_28 : f32 to vector<1x2xf32>
    %60 = arith.mulf %37, %59 : vector<1x2xf32>
    %cst_29 = arith.constant -2.048000e+03 : f32
    %61 = vector.broadcast %cst_29 : f32 to vector<1x2xf32>
    %62 = arith.mulf %39, %61 : vector<1x2xf32>
    %63 = arith.addf %60, %62 : vector<1x2xf32>
    %64 = arith.mulf %58, %63 : vector<1x2xf32>
    %65 = arith.subf %56, %64 : vector<1x2xf32>
    %66 = arith.mulf %29, %29 : vector<1x2xf32>
    %cst_30 = arith.constant 2.560000e+02 : f32
    %67 = vector.broadcast %cst_30 : f32 to vector<1x2xf32>
    %68 = arith.mulf %67, %66 : vector<1x2xf32>
    %69 = arith.addf %65, %68 : vector<1x2xf32>
    %70 = arith.mulf %41, %41 : vector<1x2xf32>
    %cst_31 = arith.constant 0x49976A00 : f32
    %71 = vector.broadcast %cst_31 : f32 to vector<1x2xf32>
    %72 = arith.mulf %70, %71 : vector<1x2xf32>
    %73 = arith.mulf %41, %43 : vector<1x2xf32>
    %cst_32 = arith.constant 2.000000e+00 : f32
    %74 = vector.broadcast %cst_32 : f32 to vector<1x2xf32>
    %75 = arith.mulf %74, %73 : vector<1x2xf32>
    %cst_33 = arith.constant 1.638400e+04 : f32
    %76 = vector.broadcast %cst_33 : f32 to vector<1x2xf32>
    %77 = arith.mulf %75, %76 : vector<1x2xf32>
    %78 = arith.addf %72, %77 : vector<1x2xf32>
    %79 = arith.mulf %43, %43 : vector<1x2xf32>
    %cst_34 = arith.constant 0x49976A00 : f32
    %80 = vector.broadcast %cst_34 : f32 to vector<1x2xf32>
    %81 = arith.mulf %79, %80 : vector<1x2xf32>
    %82 = arith.addf %78, %81 : vector<1x2xf32>
    %cst_35 = arith.constant 2.000000e+00 : f32
    %83 = vector.broadcast %cst_35 : f32 to vector<1x2xf32>
    %84 = arith.mulf %83, %35 : vector<1x2xf32>
    %cst_36 = arith.constant -2.048000e+03 : f32
    %85 = vector.broadcast %cst_36 : f32 to vector<1x2xf32>
    %86 = arith.mulf %41, %85 : vector<1x2xf32>
    %cst_37 = arith.constant -2.048000e+03 : f32
    %87 = vector.broadcast %cst_37 : f32 to vector<1x2xf32>
    %88 = arith.mulf %43, %87 : vector<1x2xf32>
    %89 = arith.addf %86, %88 : vector<1x2xf32>
    %90 = arith.mulf %84, %89 : vector<1x2xf32>
    %91 = arith.subf %82, %90 : vector<1x2xf32>
    %92 = arith.mulf %35, %35 : vector<1x2xf32>
    %cst_38 = arith.constant 2.560000e+02 : f32
    %93 = vector.broadcast %cst_38 : f32 to vector<1x2xf32>
    %94 = arith.mulf %93, %92 : vector<1x2xf32>
    %95 = arith.addf %91, %94 : vector<1x2xf32>
    %96 = arith.addf %69, %95 : vector<1x2xf32>
    %97 = vector.shape_cast %96 : vector<1x2xf32> to vector<1x1x2xf32>
    %cst_39 = arith.constant dense<0.000000e+00> : vector<1xf32>
    %98 = vector.multi_reduction <add>, %97, %cst_39 [1, 2] : vector<1x1x2xf32> to vector<1xf32>
    %99 = vector.shape_cast %98 : vector<1xf32> to vector<1x1x1xf32>
    %100 = vector.extract %99[0, 0, 0] : f32 from vector<1x1x1xf32>
    %cst_40 = arith.constant 0.001953125 : f32
    %101 = arith.mulf %100, %cst_40 : f32
    %c0_41 = arith.constant 0 : index
    %c0_42 = arith.constant 0 : index
    %102 = memref.load %arg2[%c0_41, %c0_42] : memref<1x1xf32, #tpu.memory_space<smem>>
    memref.store %101, %arg2[%c0_41, %c0_42] : memref<1x1xf32, #tpu.memory_space<smem>>
    return
  }
}

</mosaic_0001>

<llo_original>
// kernel: tpu_custom_call.1
$region0: #{tpu_custom_call.1}
  #allocation0 [shape = 'u32[]', space=smem, size = 0x4, offset = 0x4, fixed_abs, tag = 'smem constant byte address 0x4 - core index']
  #allocation1 [shape = 'u32[144,128]{1,0:T(1,128)}', space=vmem, size = 0x12000, scoped, tag = 'internal scratch']
  %s0 = inlined_call_operand.vmem [shape: f32[6,2], index: 0, kind: input, shape index: {}]
  %s1 = inlined_call_operand.vmem [shape: f32[6,2], index: 1, kind: input, shape index: {}]
  %s2 = inlined_call_operand.hbm [shape: f32[1,1], index: 2, kind: output, shape index: {}]
  %s3 = sld [smem:[#allocation0]]
  $region18: #{tpu_custom_call.1} parent=0
    _
  %s5 = ssub.s32 1, %s3
  %s6 = scalar_select 0, %s5, %s3
  $region1: #{tpu_custom_call.1} parent=0
    #allocation2 [shape = 'u8[512]{0}', space=smem, size = 0x200, scoped, tag = 'output window, operand 0, single buffered']
    #allocation3 [shape = 's32[1]{0}', space=sflag, size = 0x4, scoped, tag = 'scoped memory for tpu_custom_call.1']
    %7 = vsyncpa [#allocation3], 0
    // Predicated region
    $region2: #{tpu_custom_call.1} parent=1 // pred_check
      _
    $region3: #{tpu_custom_call.1} parent=1 // pred_check_branch
      %9 = sbr.rel (0) target = $region5
    $region4: #{tpu_custom_call.1} parent=1 // pred_region
      _
    $region5: #{tpu_custom_call.1} parent=1 // pred_fallthru
      _
    // Predicated region
    $region6: #{tpu_custom_call.1} parent=1 // pred_check
      _
    $region7: #{tpu_custom_call.1} parent=1 // pred_check_branch
      %11 = sbr.rel (0) target = $region9
    $region8: #{tpu_custom_call.1} parent=1 // pred_region
      _
    $region9: #{tpu_custom_call.1} parent=1 // pred_fallthru
      _
    %v12 = vld [vmem:[%s0] sm:$0x1]
    %v13 = vld [vmem:[%s0 + $0x1] sm:$0x1]
    %v14 = vld [vmem:[%s0 + $0x2] sm:$0x1]
    %v15 = vld [vmem:[%s0 + $0x3] sm:$0x1]
    %v16 = vld [vmem:[%s0 + $0x4] sm:$0x1]
    %v17 = vld [vmem:[%s0 + $0x5] sm:$0x1]
    %v18 = vld [vmem:[%s1] sm:$0x1]
    %v19 = vld [vmem:[%s1 + $0x1] sm:$0x1]
    %v20 = vld [vmem:[%s1 + $0x2] sm:$0x1]
    %v21 = vld [vmem:[%s1 + $0x3] sm:$0x1]
    %v22 = vld [vmem:[%s1 + $0x4] sm:$0x1]
    %v23 = vld [vmem:[%s1 + $0x5] sm:$0x1]
    %v24 = vmul.f32 %v18, %v12
    %v25 = vmul.f32 %v19, %v15
    %v26 = vadd.f32 %v24, %v25
    %v27 = vmul.f32 %v18, %v13
    %v28 = vmul.f32 %v19, %v16
    %v29 = vadd.f32 %v27, %v28
    %v30 = vmul.f32 %v21, %v12
    %v31 = vmul.f32 %v22, %v15
    %v32 = vadd.f32 %v30, %v31
    %v33 = vmul.f32 %v21, %v13
    %v34 = vmul.f32 %v22, %v16
    %v35 = vadd.f32 %v33, %v34
    %v36 = vmul.f32 %v18, %v14
    %v37 = vmul.f32 %v19, %v17
    %v38 = vadd.f32 %v36, %v37
    %v39 = vadd.f32 %v38, %v20
    %v40 = vmul.f32 %v39, 119.5
    %v41 = vmul.f32 %v21, %v14
    %v42 = vmul.f32 %v22, %v17
    %v43 = vadd.f32 %v41, %v42
    %v44 = vadd.f32 %v43, %v23
    %v45 = vmul.f32 %v44, 119.5
    %v46 = vsub.f32 1.0, %v26
    %v47 = vsub.f32 0.0, %v29
    %v48 = vsub.f32 0.0, %v32
    %v49 = vsub.f32 1.0, %v35
    %v50 = vmul.f32 %v46, %v46
    %v51 = vmul.f32 %v50, 1240384.0
    %v52 = vmul.f32 %v46, %v47
    %v53 = vmul.f32 %v52, 2.0
    %v54 = vmul.f32 %v53, 16384.0
    %v55 = vadd.f32 %v51, %v54
    %v56 = vmul.f32 %v47, %v47
    %v57 = vmul.f32 %v56, 1240384.0
    %v58 = vadd.f32 %v55, %v57
    %v59 = vmul.f32 %v40, 2.0
    %v60 = vmul.f32 %v46, -2048.0
    %v61 = vmul.f32 %v47, -2048.0
    %v62 = vadd.f32 %v60, %v61
    %v63 = vmul.f32 %v59, %v62
    %v64 = vsub.f32 %v58, %v63
    %v65 = vmul.f32 %v40, %v40
    %v66 = vmul.f32 %v65, 256.0
    %v67 = vadd.f32 %v64, %v66
    %v68 = vmul.f32 %v48, %v48
    %v69 = vmul.f32 %v68, 1240384.0
    %v70 = vmul.f32 %v48, %v49
    %v71 = vmul.f32 %v70, 2.0
    %v72 = vmul.f32 %v71, 16384.0
    %v73 = vadd.f32 %v69, %v72
    %v74 = vmul.f32 %v49, %v49
    %v75 = vmul.f32 %v74, 1240384.0
    %v76 = vadd.f32 %v73, %v75
    %v77 = vmul.f32 %v45, 2.0
    %v78 = vmul.f32 %v48, -2048.0
    %v79 = vmul.f32 %v49, -2048.0
    %v80 = vadd.f32 %v78, %v79
    %v81 = vmul.f32 %v77, %v80
    %v82 = vsub.f32 %v76, %v81
    %v83 = vmul.f32 %v45, %v45
    %v84 = vmul.f32 %v83, 256.0
    %v85 = vadd.f32 %v82, %v84
    %v86 = vadd.f32 %v67, %v85
    %vm87 = vcmask 8192
    %v88 = vsel %vm87, %v86, 0.0
    %89 = vadd.xlane.f32.xlu0 %v88
    %v90 = vpop.xlane.xlu0 %89
    %v91 = vrot.slane %v90, 4
    %v92 = vadd.f32 %v90, %v91
    %v93 = vrot.slane %v92, 2
    %v94 = vadd.f32 %v92, %v93
    %v95 = vrot.slane %v94, 1
    %v96 = vadd.f32 %v94, %v95
    %s97 = vtos %v96
    %s98 = smul.f32 %s97, 0.001953125
    %s99 = scalar_lea.smem [#allocation2], 0
    %100 = sst [smem:[%s99]] %s98
    // Predicated region
    $region10: #{tpu_custom_call.1} parent=1 // pred_check
      _
    $region11: #{tpu_custom_call.1} parent=1 // pred_check_branch
      %102 = sbr.rel (0) target = $region13
    $region12: #{tpu_custom_call.1} parent=1 // pred_region
      %s104 = ssub.s32 16, 16
      %105 = vsyncadd [#allocation3], %s104
      %108 = dma.smem_to_hbm [#allocation2], 16, %s2, [#allocation3]
    $region13: #{tpu_custom_call.1} parent=1 // pred_fallthru
      _
    // Predicated region
    $region14: #{tpu_custom_call.1} parent=1 // pred_check
      _
    $region15: #{tpu_custom_call.1} parent=1 // pred_check_branch
      %110 = sbr.rel (0) target = $region17
    $region16: #{tpu_custom_call.1} parent=1 // pred_region
      %111 = dma.done [#allocation3], 16
    $region17: #{tpu_custom_call.1} parent=1 // pred_fallthru
      _
    %112 = sfence
    %113 = vsyncpa [#allocation3], 1

</llo_original>
